<compile_context>
chip_gen: v7x
topology: tpu7x:2x2x1
jax: 0.10.0
libtpu: 0.0.40
codegen_flags: <defaults>
</compile_context>

<pallas_src>
from functools import partial

import jax
import jax.numpy as jnp
from jax.experimental import pallas as pl
from jax.experimental.pallas import tpu as pltpu


def _cdiv(a, b):
    return -(-a // b)


def _round_up(a, b):
    return _cdiv(a, b) * b


def _sepconv1d_kernel(*refs, kernel_size, stride, dilation, padding, length,
                      tl, tli, hb, has_prv, has_nxt, use_mxu, use_window):
    it = iter(refs)
    x_prv_ref = next(it) if has_prv else None   # (1, C_in, HB)
    x_cur_ref = next(it)                        # (1, C_in, TLi)
    x_nxt_ref = next(it) if has_nxt else None   # (1, C_in, HB)
    wdw_ref = next(it)                          # (C_in, K)      f32
    wpw_ref = next(it)                          # (C_out, C_in)  bf16 (MXU) / f32
    o_ref = next(it)                            # (1, C_out, TL)
    win_ref = next(it) if use_window else None  # (C_in, HB_l + TLi + HB_r), x.dtype

    j = pl.program_id(1)
    base = j * tli                              # global input pos of current block
    hb_l = hb if has_prv else 0

    if use_window:
        def paste(piece_ref, intended_start, off, width):
            # Copy one DMA'd piece into the assembled window.  Zero-masking
            # (which implements the conv zero-padding and OOB block tails) is
            # only applied when this piece actually contains out-of-range
            # positions — interior tiles take the plain-copy branch.
            if padding > 0:
                needs_mask = (intended_start < 0) | (intended_start + width > length)

                @pl.when(needs_mask)
                def _():
                    piece = piece_ref[0]                       # (C_in, width)
                    pos = intended_start + jax.lax.broadcasted_iota(
                        jnp.int32, (1, width), 1)
                    valid = (pos >= 0) & (pos < length)
                    win_ref[:, off:off + width] = jnp.where(
                        valid, piece, jnp.zeros_like(piece))

                @pl.when(jnp.logical_not(needs_mask))
                def _():
                    win_ref[:, off:off + width] = piece_ref[0]
            else:
                # padding == 0: out-of-range data can only reach output columns
                # beyond l_out, which Pallas clips on writeback — never mask.
                win_ref[:, off:off + width] = piece_ref[0]

        if has_prv:
            paste(x_prv_ref, base - hb, 0, hb)
        paste(x_cur_ref, base, hb_l, tli)
        if has_nxt:
            paste(x_nxt_ref, base + tli, hb_l + tli, hb)

    # --- Depthwise FIR: K shifted reads, f32 accumulation in registers (VPU).
    o0 = hb_l - padding                          # window index of tap 0, lane 0
    wdw = wdw_ref[...]                           # f32, hoisted out of the K loop
    acc = None
    for k in range(kernel_size):
        start = o0 + k * dilation                # static Python int
        if use_window:
            if stride == 1:
                tap = win_ref[:, start:start + tl]
            else:
                tap = win_ref[:, pl.ds(start, tl, stride=stride)]
        else:
            if stride == 1:
                tap = x_cur_ref[0, :, start:start + tl]
            else:
                tap = x_cur_ref[0, :, pl.ds(start, tl, stride=stride)]
        term = tap.astype(jnp.float32) * wdw[:, k:k + 1]
        acc = term if acc is None else acc + term

    # --- Pointwise 1x1 conv over channels, fed directly from the live
    #     accumulator (no scratch round trip).
    if use_mxu:
        # (C_out, C_in) @ (C_in, TL): bf16-fed MXU, f32 accumulate, lane-dense out.
        out = jnp.dot(wpw_ref[...], acc.astype(jnp.bfloat16),
                      preferred_element_type=jnp.float32)
    else:
        # Small C_in: channel reduction as VPU broadcast-FMAs in f32.
        wpw = wpw_ref[...]
        c_in = wpw.shape[1]
        out = None
        for ci in range(c_in):
            term = wpw[:, ci:ci + 1] * acc[ci:ci + 1, :]       # (C_out, TL)
            out = term if out is None else out + term
    o_ref[0] = out.astype(o_ref.dtype)


def separable_conv1d(x, w_dw, w_pw, *, stride=1, padding=0, dilation=1,
                     tl=None, vmem_budget=24 * 1024 * 1024, mxu_pointwise=None):
    """Forward pass of SeparableConv1d (bias=False).

    x:    (N, C_in, L)       PyTorch NCL layout
    w_dw: (C_in, 1, K)       depthwise conv weight (groups = C_in)
    w_pw: (C_out, C_in, 1)   pointwise 1x1 conv weight
    mxu_pointwise: force MXU (True) / VPU-f32 (False) pointwise; None = auto.
    """
    n, c_in, length = x.shape
    k = w_dw.shape[-1]
    c_out = w_pw.shape[0]
    l_out = (length + 2 * padding - dilation * (k - 1) - 1) // stride + 1
    assert l_out > 0, "empty output"

    # Halo sizes (input elements) needed on each side of a tile's core block.
    left_need = padding
    right_need = max((k - 1) * dilation + 1 - stride - padding, 0)
    has_prv = left_need > 0
    has_nxt = right_need > 0
    use_window = has_prv or has_nxt
    hb = _round_up(max(left_need, right_need, 1), 128)
    hb_l = hb if has_prv else 0
    hb_r = hb if has_nxt else 0

    use_mxu = (c_in >= 16) if mxu_pointwise is None else bool(mxu_pointwise)
    itemsize = jnp.dtype(x.dtype).itemsize

    # Output-length tile TL: multiple of HB (hence of 128).  Default target is
    # large (2048) so halo over-fetch is small; clamp against a VMEM budget
    # that includes the f32 intermediates.
    target = tl if tl is not None else 2048
    tl_ = max(hb, _round_up(min(target, l_out), hb))

    def vmem_est(t):
        tli_ = t * stride
        win = (hb_l + hb_r + tli_) * c_in * itemsize if use_window else 0
        xin = 2 * (tli_ + hb_l + hb_r) * c_in * itemsize   # double-buffered x pieces
        accb = t * c_in * 4                                # f32 FIR accumulator
        dwb = t * c_in * 2 if use_mxu else 0               # bf16 cast of accumulator
        outb = 2 * t * c_out * itemsize + t * c_out * 4    # dbl-buffered out + f32 regs
        wgt = c_in * k * 4 + c_out * c_in * (2 if use_mxu else 4)
        return win + xin + accb + dwb + outb + wgt

    while tl_ > hb and vmem_est(tl_) > vmem_budget:
        tl_ -= hb
    if tl is None:
        # Megacore load balance (v7x has 2 TCs): keep a few parallel tiles.
        while tl_ > hb and n * _cdiv(l_out, tl_) < 4:
            tl_ -= hb

    tli = tl_ * stride
    r = tli // hb
    j_tiles = _cdiv(l_out, tl_)
    n_cur_blocks = _cdiv(length, tli)
    n_hb_blocks = _cdiv(length, hb)

    # Explicit scoped-VMEM limit: above v5e's 16 MiB default, with headroom
    # over the estimate, but well inside v7x's 64 MiB physical VMEM.
    vmem_limit = int(min(max(2 * vmem_est(tl_), 32 * 1024 * 1024),
                         50 * 1024 * 1024))

    # Pre-cast weights in the wrapper (no per-grid-step casts in the kernel).
    wdw = w_dw[:, 0, :].astype(jnp.float32)                 # (C_in, K)
    wpw = w_pw[:, :, 0].astype(jnp.bfloat16 if use_mxu else jnp.float32)

    # Up to three BlockSpec views of x (prev-halo / current / next-halo).
    # Edge clamping in the index maps is safe: whenever a clamp fires, every
    # affected position is out-of-range and is either masked to zero in-kernel
    # (padding > 0) or only feeds output columns clipped on writeback.
    in_specs = []
    inputs = []
    if has_prv:
        in_specs.append(pl.BlockSpec(
            (1, c_in, hb),
            lambda b, j: (b, 0,
                          jnp.maximum(jnp.minimum(j * r - 1, n_hb_blocks - 1), 0))))
        inputs.append(x)
    in_specs.append(pl.BlockSpec(
        (1, c_in, tli),
        lambda b, j: (b, 0, jnp.minimum(j, n_cur_blocks - 1))))
    inputs.append(x)
    if has_nxt:
        in_specs.append(pl.BlockSpec(
            (1, c_in, hb),
            lambda b, j: (b, 0, jnp.minimum((j + 1) * r, n_hb_blocks - 1))))
        inputs.append(x)
    in_specs.append(pl.BlockSpec((c_in, k), lambda b, j: (0, 0)))
    inputs.append(wdw)
    in_specs.append(pl.BlockSpec((c_out, c_in), lambda b, j: (0, 0)))
    inputs.append(wpw)

    scratch_shapes = []
    if use_window:
        scratch_shapes.append(pltpu.VMEM((c_in, hb_l + tli + hb_r), x.dtype))

    kern = partial(_sepconv1d_kernel, kernel_size=k, stride=stride,
                   dilation=dilation, padding=padding, length=length,
                   tl=tl_, tli=tli, hb=hb, has_prv=has_prv, has_nxt=has_nxt,
                   use_mxu=use_mxu, use_window=use_window)

    out = pl.pallas_call(
        kern,
        out_shape=jax.ShapeDtypeStruct((n, c_out, l_out), x.dtype),
        grid_spec=pltpu.PrefetchScalarGridSpec(
            num_scalar_prefetch=0,
            grid=(n, j_tiles),
            in_specs=in_specs,
            out_specs=pl.BlockSpec((1, c_out, tl_), lambda b, j: (b, 0, j)),
            scratch_shapes=scratch_shapes,
        ),
        compiler_params=pltpu.CompilerParams(
            dimension_semantics=("parallel", "parallel"),
            vmem_limit_bytes=vmem_limit),
    )(*inputs)
    return out


def _reference(x, w_dw, w_pw, stride, padding, dilation):
    dw = jax.lax.conv_general_dilated(
        x, w_dw, window_strides=(stride,), padding=[(padding, padding)],
        rhs_dilation=(dilation,), dimension_numbers=("NCH", "OIH", "NCH"),
        feature_group_count=x.shape[1])
    return jax.lax.conv_general_dilated(
        dw, w_pw, window_strides=(1,), padding=[(0, 0)],
        dimension_numbers=("NCH", "OIH", "NCH"))


if __name__ == "__main__":
    def run_case(name, n, c_in, c_out, length, k, stride, padding, dilation,
                 tl, tol):
        key = jax.random.PRNGKey(0)
        kx, kd, kp = jax.random.split(key, 3)
        x = jax.random.normal(kx, (n, c_in, length), jnp.float32)
        w_dw = jax.random.normal(kd, (c_in, 1, k), jnp.float32) * 0.1
        w_pw = jax.random.normal(kp, (c_out, c_in, 1), jnp.float32) * 0.1
        out = separable_conv1d(x, w_dw, w_pw, stride=stride, padding=padding,
                               dilation=dilation, tl=tl)
        out = jax.block_until_ready(out)
        ref = _reference(x, w_dw, w_pw, stride, padding, dilation)
        assert out.shape == ref.shape, (name, out.shape, ref.shape)
        err = float(jnp.max(jnp.abs(out - ref)))
        assert jnp.allclose(out, ref, atol=tol, rtol=tol), (name, err)

    # (name,        n, C_in, C_out,    L, K, s, p, d,   TL,  tol)
    run_case("toy",   2,   8,   16,  128, 3, 1, 1, 1, None, 1e-4)  # VPU pointwise, padding
    run_case("tiled", 2,   8,   16,  512, 5, 1, 2, 2,  256, 1e-4)  # halos across L tiles, dilation
    run_case("nopad", 1,   8,    8,  256, 3, 1, 0, 1,  128, 1e-4)  # padding==0: mask-free path
    run_case("k1",    1,   8,    8,  128, 1, 1, 0, 1, None, 1e-4)  # pointwise-only, no window
    run_case("mxu",   1, 128,   64,  256, 3, 1, 1, 1, None, 2e-2)  # bf16-fed MXU pointwise path
    print("KERNEL_OK")
</pallas_src>

<mosaic_0001>
module attributes {stable_mosaic.version = 11 : i64} {
  func.func @_sepconv1d_kernel(%arg0: i32, %arg1: i32, %arg2: memref<1x8x128xf32, #tpu.memory_space<vmem>>, %arg3: memref<1x8x128xf32, #tpu.memory_space<vmem>>, %arg4: memref<1x8x128xf32, #tpu.memory_space<vmem>>, %arg5: memref<8x3xf32, #tpu.memory_space<vmem>>, %arg6: memref<16x8xf32, #tpu.memory_space<vmem>>, %arg7: memref<1x16x128xf32, #tpu.memory_space<vmem>>, %arg8: memref<8x384xf32, #tpu.memory_space<vmem>>) attributes {dimension_semantics = [#tpu.dimension_semantics<parallel>, #tpu.dimension_semantics<parallel>], iteration_bounds = array<i64: 2, 1>, scalar_prefetch = 0 : i64, scratch_operands = 1 : i64, tpu.core_type = #tpu.core_type<tc>, window_params = [{transform_indices = @transform_0, window_bounds = array<i64: 1, 8, 128>}, {transform_indices = @transform_1, window_bounds = array<i64: 1, 8, 128>}, {transform_indices = @transform_2, window_bounds = array<i64: 1, 8, 128>}, {pipeline_mode = #tpu.pipeline_mode<synchronous>, transform_indices = @transform_3, window_bounds = array<i64: 8, 3>}, {pipeline_mode = #tpu.pipeline_mode<synchronous>, transform_indices = @transform_4, window_bounds = array<i64: 16, 8>}, {transform_indices = @transform_5, window_bounds = array<i64: 1, 16, 128>}]} {
    %c128_i32 = arith.constant 128 : i32
    %0 = arith.muli %arg1, %c128_i32 : i32
    %c128_i32_0 = arith.constant 128 : i32
    %1 = arith.subi %0, %c128_i32_0 : i32
    %c0_i32 = arith.constant 0 : i32
    %2 = arith.cmpi slt, %1, %c0_i32 : i32
    %c128_i32_1 = arith.constant 128 : i32
    %3 = arith.addi %1, %c128_i32_1 : i32
    %c128_i32_2 = arith.constant 128 : i32
    %4 = arith.cmpi sgt, %3, %c128_i32_2 : i32
    %5 = arith.ori %2, %4 : i1
    %6 = arith.extui %5 : i1 to i32
    %c0_i32_3 = arith.constant 0 : i32
    %7 = arith.cmpi ne, %6, %c0_i32_3 : i32
    scf.if %7 {
      %c0_27 = arith.constant 0 : index
      %c0_28 = arith.constant 0 : index
      %c0_29 = arith.constant 0 : index
      %96 = vector.load %arg2[%c0_27, %c0_28, %c0_29] : memref<1x8x128xf32, #tpu.memory_space<vmem>>, vector<1x8x128xf32>
      %97 = vector.shape_cast %96 : vector<1x8x128xf32> to vector<8x128xf32>
      %98 = tpu.iota {dimensions = array<i32: 1>} : vector<1x128xi32>
      %99 = vector.broadcast %1 : i32 to vector<1x128xi32>
      %100 = arith.addi %99, %98 : vector<1x128xi32>
      %c0_i32_30 = arith.constant 0 : i32
      %101 = vector.broadcast %c0_i32_30 : i32 to vector<1x128xi32>
      %102 = arith.cmpi sge, %100, %101 : vector<1x128xi32>
      %c128_i32_31 = arith.constant 128 : i32
      %103 = vector.broadcast %c128_i32_31 : i32 to vector<1x128xi32>
      %104 = arith.cmpi slt, %100, %103 : vector<1x128xi32>
      %105 = arith.andi %102, %104 : vector<1x128xi1>
      %cst = arith.constant 0.000000e+00 : f32
      %106 = vector.broadcast %cst : f32 to vector<8x128xf32>
      %107 = vector.shape_cast %105 : vector<1x128xi1> to vector<1x128xi1>
      %108 = vector.broadcast %107 : vector<1x128xi1> to vector<8x128xi1>
      %109 = arith.select %108, %97, %106 : vector<8x128xi1>, vector<8x128xf32>
      %c0_32 = arith.constant 0 : index
      %c0_33 = arith.constant 0 : index
      %110 = vector.load %arg8[%c0_32, %c0_33] : memref<8x384xf32, #tpu.memory_space<vmem>>, vector<8x128xf32>
      tpu.vector_store %arg8[%c0_32, %c0_33], %109 {strides = array<i32>} : memref<8x384xf32, #tpu.memory_space<vmem>>, vector<8x128xf32>,
    } else {
    }
    %true = arith.constant true
    %8 = arith.xori %5, %true : i1
    %9 = arith.extui %8 : i1 to i32
    %c0_i32_4 = arith.constant 0 : i32
    %10 = arith.cmpi ne, %9, %c0_i32_4 : i32
    scf.if %10 {
      %c0_27 = arith.constant 0 : index
      %c0_28 = arith.constant 0 : index
      %c0_29 = arith.constant 0 : index
      %96 = vector.load %arg2[%c0_27, %c0_28, %c0_29] : memref<1x8x128xf32, #tpu.memory_space<vmem>>, vector<1x8x128xf32>
      %97 = vector.shape_cast %96 : vector<1x8x128xf32> to vector<8x128xf32>
      %c0_30 = arith.constant 0 : index
      %c0_31 = arith.constant 0 : index
      %98 = vector.load %arg8[%c0_30, %c0_31] : memref<8x384xf32, #tpu.memory_space<vmem>>, vector<8x128xf32>
      tpu.vector_store %arg8[%c0_30, %c0_31], %97 {strides = array<i32>} : memref<8x384xf32, #tpu.memory_space<vmem>>, vector<8x128xf32>,
    } else {
    }
    %c0_i32_5 = arith.constant 0 : i32
    %11 = arith.cmpi slt, %0, %c0_i32_5 : i32
    %c128_i32_6 = arith.constant 128 : i32
    %12 = arith.addi %0, %c128_i32_6 : i32
    %c128_i32_7 = arith.constant 128 : i32
    %13 = arith.cmpi sgt, %12, %c128_i32_7 : i32
    %14 = arith.ori %11, %13 : i1
    %15 = arith.extui %14 : i1 to i32
    %c0_i32_8 = arith.constant 0 : i32
    %16 = arith.cmpi ne, %15, %c0_i32_8 : i32
    scf.if %16 {
      %c0_27 = arith.constant 0 : index
      %c0_28 = arith.constant 0 : index
      %c0_29 = arith.constant 0 : index
      %96 = vector.load %arg3[%c0_27, %c0_28, %c0_29] : memref<1x8x128xf32, #tpu.memory_space<vmem>>, vector<1x8x128xf32>
      %97 = vector.shape_cast %96 : vector<1x8x128xf32> to vector<8x128xf32>
      %98 = tpu.iota {dimensions = array<i32: 1>} : vector<1x128xi32>
      %99 = vector.broadcast %0 : i32 to vector<1x128xi32>
      %100 = arith.addi %99, %98 : vector<1x128xi32>
      %c0_i32_30 = arith.constant 0 : i32
      %101 = vector.broadcast %c0_i32_30 : i32 to vector<1x128xi32>
      %102 = arith.cmpi sge, %100, %101 : vector<1x128xi32>
      %c128_i32_31 = arith.constant 128 : i32
      %103 = vector.broadcast %c128_i32_31 : i32 to vector<1x128xi32>
      %104 = arith.cmpi slt, %100, %103 : vector<1x128xi32>
      %105 = arith.andi %102, %104 : vector<1x128xi1>
      %cst = arith.constant 0.000000e+00 : f32
      %106 = vector.broadcast %cst : f32 to vector<8x128xf32>
      %107 = vector.shape_cast %105 : vector<1x128xi1> to vector<1x128xi1>
      %108 = vector.broadcast %107 : vector<1x128xi1> to vector<8x128xi1>
      %109 = arith.select %108, %97, %106 : vector<8x128xi1>, vector<8x128xf32>
      %c0_32 = arith.constant 0 : index
      %c128_33 = arith.constant 128 : index
      %110 = vector.load %arg8[%c0_32, %c128_33] : memref<8x384xf32, #tpu.memory_space<vmem>>, vector<8x128xf32>
      tpu.vector_store %arg8[%c0_32, %c128_33], %109 {strides = array<i32>} : memref<8x384xf32, #tpu.memory_space<vmem>>, vector<8x128xf32>,
    } else {
    }
    %true_9 = arith.constant true
    %17 = arith.xori %14, %true_9 : i1
    %18 = arith.extui %17 : i1 to i32
    %c0_i32_10 = arith.constant 0 : i32
    %19 = arith.cmpi ne, %18, %c0_i32_10 : i32
    scf.if %19 {
      %c0_27 = arith.constant 0 : index
      %c0_28 = arith.constant 0 : index
      %c0_29 = arith.constant 0 : index
      %96 = vector.load %arg3[%c0_27, %c0_28, %c0_29] : memref<1x8x128xf32, #tpu.memory_space<vmem>>, vector<1x8x128xf32>
      %97 = vector.shape_cast %96 : vector<1x8x128xf32> to vector<8x128xf32>
      %c0_30 = arith.constant 0 : index
      %c128_31 = arith.constant 128 : index
      %98 = vector.load %arg8[%c0_30, %c128_31] : memref<8x384xf32, #tpu.memory_space<vmem>>, vector<8x128xf32>
      tpu.vector_store %arg8[%c0_30, %c128_31], %97 {strides = array<i32>} : memref<8x384xf32, #tpu.memory_space<vmem>>, vector<8x128xf32>,
    } else {
    }
    %c128_i32_11 = arith.constant 128 : i32
    %20 = arith.addi %0, %c128_i32_11 : i32
    %c0_i32_12 = arith.constant 0 : i32
    %21 = arith.cmpi slt, %20, %c0_i32_12 : i32
    %c128_i32_13 = arith.constant 128 : i32
    %22 = arith.addi %20, %c128_i32_13 : i32
    %c128_i32_14 = arith.constant 128 : i32
    %23 = arith.cmpi sgt, %22, %c128_i32_14 : i32
    %24 = arith.ori %21, %23 : i1
    %25 = arith.extui %24 : i1 to i32
    %c0_i32_15 = arith.constant 0 : i32
    %26 = arith.cmpi ne, %25, %c0_i32_15 : i32
    scf.if %26 {
      %c0_27 = arith.constant 0 : index
      %c0_28 = arith.constant 0 : index
      %c0_29 = arith.constant 0 : index
      %96 = vector.load %arg4[%c0_27, %c0_28, %c0_29] : memref<1x8x128xf32, #tpu.memory_space<vmem>>, vector<1x8x128xf32>
      %97 = vector.shape_cast %96 : vector<1x8x128xf32> to vector<8x128xf32>
      %98 = tpu.iota {dimensions = array<i32: 1>} : vector<1x128xi32>
      %99 = vector.broadcast %20 : i32 to vector<1x128xi32>
      %100 = arith.addi %99, %98 : vector<1x128xi32>
      %c0_i32_30 = arith.constant 0 : i32
      %101 = vector.broadcast %c0_i32_30 : i32 to vector<1x128xi32>
      %102 = arith.cmpi sge, %100, %101 : vector<1x128xi32>
      %c128_i32_31 = arith.constant 128 : i32
      %103 = vector.broadcast %c128_i32_31 : i32 to vector<1x128xi32>
      %104 = arith.cmpi slt, %100, %103 : vector<1x128xi32>
      %105 = arith.andi %102, %104 : vector<1x128xi1>
      %cst = arith.constant 0.000000e+00 : f32
      %106 = vector.broadcast %cst : f32 to vector<8x128xf32>
      %107 = vector.shape_cast %105 : vector<1x128xi1> to vector<1x128xi1>
      %108 = vector.broadcast %107 : vector<1x128xi1> to vector<8x128xi1>
      %109 = arith.select %108, %97, %106 : vector<8x128xi1>, vector<8x128xf32>
      %c0_32 = arith.constant 0 : index
      %c256 = arith.constant 256 : index
      %110 = vector.load %arg8[%c0_32, %c256] : memref<8x384xf32, #tpu.memory_space<vmem>>, vector<8x128xf32>
      tpu.vector_store %arg8[%c0_32, %c256], %109 {strides = array<i32>} : memref<8x384xf32, #tpu.memory_space<vmem>>, vector<8x128xf32>,
    } else {
    }
    %true_16 = arith.constant true
    %27 = arith.xori %24, %true_16 : i1
    %28 = arith.extui %27 : i1 to i32
    %c0_i32_17 = arith.constant 0 : i32
    %29 = arith.cmpi ne, %28, %c0_i32_17 : i32
    scf.if %29 {
      %c0_27 = arith.constant 0 : index
      %c0_28 = arith.constant 0 : index
      %c0_29 = arith.constant 0 : index
      %96 = vector.load %arg4[%c0_27, %c0_28, %c0_29] : memref<1x8x128xf32, #tpu.memory_space<vmem>>, vector<1x8x128xf32>
      %97 = vector.shape_cast %96 : vector<1x8x128xf32> to vector<8x128xf32>
      %c0_30 = arith.constant 0 : index
      %c256 = arith.constant 256 : index
      %98 = vector.load %arg8[%c0_30, %c256] : memref<8x384xf32, #tpu.memory_space<vmem>>, vector<8x128xf32>
      tpu.vector_store %arg8[%c0_30, %c256], %97 {strides = array<i32>} : memref<8x384xf32, #tpu.memory_space<vmem>>, vector<8x128xf32>,
    } else {
    }
    %c0 = arith.constant 0 : index
    %c0_18 = arith.constant 0 : index
    %30 = vector.load %arg5[%c0, %c0_18] : memref<8x3xf32, #tpu.memory_space<vmem>>, vector<8x3xf32>
    %c0_19 = arith.constant 0 : index
    %c127 = arith.constant 127 : index
    %31 = vector.load %arg8[%c0_19, %c127] : memref<8x384xf32, #tpu.memory_space<vmem>>, vector<8x128xf32>
    %32 = vector.extract_strided_slice %30 {offsets = [0, 0], sizes = [8, 1], strides = [1, 1]} : vector<8x3xf32> to vector<8x1xf32>
    %33 = vector.broadcast %32 : vector<8x1xf32> to vector<8x128xf32>
    %34 = arith.mulf %31, %33 : vector<8x128xf32>
    %c0_20 = arith.constant 0 : index
    %c128 = arith.constant 128 : index
    %35 = vector.load %arg8[%c0_20, %c128] : memref<8x384xf32, #tpu.memory_space<vmem>>, vector<8x128xf32>
    %36 = vector.extract_strided_slice %30 {offsets = [0, 1], sizes = [8, 1], strides = [1, 1]} : vector<8x3xf32> to vector<8x1xf32>
    %37 = vector.broadcast %36 : vector<8x1xf32> to vector<8x128xf32>
    %38 = arith.mulf %35, %37 : vector<8x128xf32>
    %39 = arith.addf %34, %38 : vector<8x128xf32>
    %c0_21 = arith.constant 0 : index
    %c129 = arith.constant 129 : index
    %40 = vector.load %arg8[%c0_21, %c129] : memref<8x384xf32, #tpu.memory_space<vmem>>, vector<8x128xf32>
    %41 = vector.extract_strided_slice %30 {offsets = [0, 2], sizes = [8, 1], strides = [1, 1]} : vector<8x3xf32> to vector<8x1xf32>
    %42 = vector.broadcast %41 : vector<8x1xf32> to vector<8x128xf32>
    %43 = arith.mulf %40, %42 : vector<8x128xf32>
    %44 = arith.addf %39, %43 : vector<8x128xf32>
    %c0_22 = arith.constant 0 : index
    %c0_23 = arith.constant 0 : index
    %45 = vector.load %arg6[%c0_22, %c0_23] : memref<16x8xf32, #tpu.memory_space<vmem>>, vector<16x8xf32>
    %46 = vector.extract_strided_slice %45 {offsets = [0, 0], sizes = [16, 1], strides = [1, 1]} : vector<16x8xf32> to vector<16x1xf32>
    %47 = vector.extract_strided_slice %44 {offsets = [0, 0], sizes = [1, 128], strides = [1, 1]} : vector<8x128xf32> to vector<1x128xf32>
    %48 = vector.broadcast %46 : vector<16x1xf32> to vector<16x128xf32>
    %49 = vector.broadcast %47 : vector<1x128xf32> to vector<16x128xf32>
    %50 = arith.mulf %48, %49 : vector<16x128xf32>
    %51 = vector.extract_strided_slice %45 {offsets = [0, 1], sizes = [16, 1], strides = [1, 1]} : vector<16x8xf32> to vector<16x1xf32>
    %52 = vector.extract_strided_slice %44 {offsets = [1, 0], sizes = [1, 128], strides = [1, 1]} : vector<8x128xf32> to vector<1x128xf32>
    %53 = vector.broadcast %51 : vector<16x1xf32> to vector<16x128xf32>
    %54 = vector.broadcast %52 : vector<1x128xf32> to vector<16x128xf32>
    %55 = arith.mulf %53, %54 : vector<16x128xf32>
    %56 = arith.addf %50, %55 : vector<16x128xf32>
    %57 = vector.extract_strided_slice %45 {offsets = [0, 2], sizes = [16, 1], strides = [1, 1]} : vector<16x8xf32> to vector<16x1xf32>
    %58 = vector.extract_strided_slice %44 {offsets = [2, 0], sizes = [1, 128], strides = [1, 1]} : vector<8x128xf32> to vector<1x128xf32>
    %59 = vector.broadcast %57 : vector<16x1xf32> to vector<16x128xf32>
    %60 = vector.broadcast %58 : vector<1x128xf32> to vector<16x128xf32>
    %61 = arith.mulf %59, %60 : vector<16x128xf32>
    %62 = arith.addf %56, %61 : vector<16x128xf32>
    %63 = vector.extract_strided_slice %45 {offsets = [0, 3], sizes = [16, 1], strides = [1, 1]} : vector<16x8xf32> to vector<16x1xf32>
    %64 = vector.extract_strided_slice %44 {offsets = [3, 0], sizes = [1, 128], strides = [1, 1]} : vector<8x128xf32> to vector<1x128xf32>
    %65 = vector.broadcast %63 : vector<16x1xf32> to vector<16x128xf32>
    %66 = vector.broadcast %64 : vector<1x128xf32> to vector<16x128xf32>
    %67 = arith.mulf %65, %66 : vector<16x128xf32>
    %68 = arith.addf %62, %67 : vector<16x128xf32>
    %69 = vector.extract_strided_slice %45 {offsets = [0, 4], sizes = [16, 1], strides = [1, 1]} : vector<16x8xf32> to vector<16x1xf32>
    %70 = vector.extract_strided_slice %44 {offsets = [4, 0], sizes = [1, 128], strides = [1, 1]} : vector<8x128xf32> to vector<1x128xf32>
    %71 = vector.broadcast %69 : vector<16x1xf32> to vector<16x128xf32>
    %72 = vector.broadcast %70 : vector<1x128xf32> to vector<16x128xf32>
    %73 = arith.mulf %71, %72 : vector<16x128xf32>
    %74 = arith.addf %68, %73 : vector<16x128xf32>
    %75 = vector.extract_strided_slice %45 {offsets = [0, 5], sizes = [16, 1], strides = [1, 1]} : vector<16x8xf32> to vector<16x1xf32>
    %76 = vector.extract_strided_slice %44 {offsets = [5, 0], sizes = [1, 128], strides = [1, 1]} : vector<8x128xf32> to vector<1x128xf32>
    %77 = vector.broadcast %75 : vector<16x1xf32> to vector<16x128xf32>
    %78 = vector.broadcast %76 : vector<1x128xf32> to vector<16x128xf32>
    %79 = arith.mulf %77, %78 : vector<16x128xf32>
    %80 = arith.addf %74, %79 : vector<16x128xf32>
    %81 = vector.extract_strided_slice %45 {offsets = [0, 6], sizes = [16, 1], strides = [1, 1]} : vector<16x8xf32> to vector<16x1xf32>
    %82 = vector.extract_strided_slice %44 {offsets = [6, 0], sizes = [1, 128], strides = [1, 1]} : vector<8x128xf32> to vector<1x128xf32>
    %83 = vector.broadcast %81 : vector<16x1xf32> to vector<16x128xf32>
    %84 = vector.broadcast %82 : vector<1x128xf32> to vector<16x128xf32>
    %85 = arith.mulf %83, %84 : vector<16x128xf32>
    %86 = arith.addf %80, %85 : vector<16x128xf32>
    %87 = vector.extract_strided_slice %45 {offsets = [0, 7], sizes = [16, 1], strides = [1, 1]} : vector<16x8xf32> to vector<16x1xf32>
    %88 = vector.extract_strided_slice %44 {offsets = [7, 0], sizes = [1, 128], strides = [1, 1]} : vector<8x128xf32> to vector<1x128xf32>
    %89 = vector.broadcast %87 : vector<16x1xf32> to vector<16x128xf32>
    %90 = vector.broadcast %88 : vector<1x128xf32> to vector<16x128xf32>
    %91 = arith.mulf %89, %90 : vector<16x128xf32>
    %92 = arith.addf %86, %91 : vector<16x128xf32>
    %c0_24 = arith.constant 0 : index
    %c0_25 = arith.constant 0 : index
    %c0_26 = arith.constant 0 : index
    %93 = vector.load %arg7[%c0_24, %c0_25, %c0_26] : memref<1x16x128xf32, #tpu.memory_space<vmem>>, vector<1x16x128xf32>
    %94 = vector.shape_cast %93 : vector<1x16x128xf32> to vector<16x128xf32>
    %95 = vector.shape_cast %92 : vector<16x128xf32> to vector<1x16x128xf32>
    tpu.vector_store %arg7[%c0_24, %c0_25, %c0_26], %95 {strides = array<i32>} : memref<1x16x128xf32, #tpu.memory_space<vmem>>, vector<1x16x128xf32>,
    return
  }
  func.func @transform_0(%arg0: i32, %arg1: i32) -> (i32, i32, i32) {
    %c1_i32 = arith.constant 1 : i32
    %0 = arith.muli %arg1, %c1_i32 : i32
    %c1_i32_0 = arith.constant 1 : i32
    %1 = arith.subi %0, %c1_i32_0 : i32
    %c0_i32 = arith.constant 0 : i32
    %2 = arith.minsi %1, %c0_i32 : i32
    %c0_i32_1 = arith.constant 0 : i32
    %3 = arith.maxsi %2, %c0_i32_1 : i32
    %c0_i32_2 = arith.constant 0 : i32
    %c0_i32_3 = arith.constant 0 : i32
    return %arg0, %c0_i32_2, %3 : i32, i32, i32
  }
  func.func @transform_1(%arg0: i32, %arg1: i32) -> (i32, i32, i32) {
    %c0_i32 = arith.constant 0 : i32
    %0 = arith.minsi %arg1, %c0_i32 : i32
    %c0_i32_0 = arith.constant 0 : i32
    %c0_i32_1 = arith.constant 0 : i32
    return %arg0, %c0_i32_0, %0 : i32, i32, i32
  }
  func.func @transform_2(%arg0: i32, %arg1: i32) -> (i32, i32, i32) {
    %c1_i32 = arith.constant 1 : i32
    %0 = arith.addi %arg1, %c1_i32 : i32
    %c1_i32_0 = arith.constant 1 : i32
    %1 = arith.muli %0, %c1_i32_0 : i32
    %c0_i32 = arith.constant 0 : i32
    %2 = arith.minsi %1, %c0_i32 : i32
    %c0_i32_1 = arith.constant 0 : i32
    %c0_i32_2 = arith.constant 0 : i32
    return %arg0, %c0_i32_1, %2 : i32, i32, i32
  }
  func.func @transform_3(%arg0: i32, %arg1: i32) -> (i32, i32) {
    %c0_i32 = arith.constant 0 : i32
    %c0_i32_0 = arith.constant 0 : i32
    %c0_i32_1 = arith.constant 0 : i32
    return %c0_i32, %c0_i32_0 : i32, i32
  }
  func.func @transform_4(%arg0: i32, %arg1: i32) -> (i32, i32) {
    %c0_i32 = arith.constant 0 : i32
    %c0_i32_0 = arith.constant 0 : i32
    %c0_i32_1 = arith.constant 0 : i32
    return %c0_i32, %c0_i32_0 : i32, i32
  }
  func.func @transform_5(%arg0: i32, %arg1: i32) -> (i32, i32, i32) {
    %c0_i32 = arith.constant 0 : i32
    %c0_i32_0 = arith.constant 0 : i32
    return %arg0, %c0_i32, %arg1 : i32, i32, i32
  }
}

</mosaic_0001>

<llo_original>
// kernel: tpu_custom_call.1
$region0: #{tpu_custom_call.1}
  #allocation0 [shape = 'u32[]', space=smem, size = 0x4, offset = 0x4, fixed_abs, tag = 'smem constant byte address 0x4 - core index']
  #allocation1 [shape = 'u32[144,128]{1,0:T(1,128)}', space=vmem, size = 0x12000, scoped, tag = 'internal scratch']
  #allocation2 [shape = 'f32[8,384]{1,0:T(8,128)}', space=vmem, size = 0x3000, scoped, tag = 'scratch operand']
  %s0 = inlined_call_operand.vmem [shape: f32[2,8,128], index: 0, kind: input, shape index: {}]
  %s1 = inlined_call_operand.vmem [shape: f32[2,8,128], index: 1, kind: input, shape index: {}]
  %s2 = inlined_call_operand.hbm [shape: f32[2,8,128], index: 2, kind: input, shape index: {}]
  %s3 = inlined_call_operand.vmem [shape: f32[8,3], index: 3, kind: input, shape index: {}]
  %s4 = inlined_call_operand.vmem [shape: f32[16,8], index: 4, kind: input, shape index: {}]
  %s5 = inlined_call_operand.hbm [shape: f32[2,16,128], index: 5, kind: output, shape index: {}]
  %s6 = sld [smem:[#allocation0]]
  $region81: #{tpu_custom_call.1} parent=0
    _
  %s8 = ssub.s32 1, %s6
  %s9 = scalar_select 0, %s8, %s6
  $region1: #{tpu_custom_call.1} parent=0
    #allocation3 [shape = 'u8[8192]{0}', space=vmem, size = 0x2000, scoped, tag = 'input window, operand 2']
    #allocation4 [shape = 's32[2]{0}', space=sflag, size = 0x8, scoped, tag = 'scoped memory for tpu_custom_call.1']
    #allocation5 [shape = 's32[2]{0}', space=sflag, size = 0x8, scoped, tag = 'scoped memory for tpu_custom_call.1']
    #allocation6 [shape = 'u8[16384]{0}', space=vmem, size = 0x4000, scoped, tag = 'output window, operand 0']
    %10 = vsyncpa [#allocation4], 0
    %s11 = scalar_lea.sflag [#allocation4], 1
    %12 = vsyncpa %s11, 0
    %13 = vsyncpa [#allocation5], 0
    %s14 = scalar_lea.sflag [#allocation5], 1
    %15 = vsyncpa %s14, 0
    loop: start=0, step=1, limit=4
    $region2: #{tpu_custom_call.1} parent=1 // loop_pre_header
      _
    $region3: #{tpu_custom_call.1} parent=1 // loop_header
      %s17 = sphi 0, %s21
      %p18 = scmp.ge.s32.totalorder %s17, 4
      %s24 = sphi 0, %s36
      %s25 = sphi 0, %s32
      %s26 = sphi 0, %s24
      %s27 = sphi 0, %s25
      %s28 = sphi 0, %s26
      %s29 = sphi 0, %s27
      %s51 = sphi 0, %s53
      %s54 = sphi 0, %s51
      %s55 = sphi 0, %s54
      %s71 = sphi 0, %s55
      %s83 = sphi 0, %s85
      %s86 = sphi 0, %s83
      %s87 = sphi 0, %s86
      %s103 = sphi 0, %s87
      %s117 = sphi 0, %s119
      %s120 = sphi 0, %s117
      %s121 = sphi 0, %s120
      %s137 = sphi 0, %s121
      %s141 = sphi 0, %s141
      %s143 = sphi 0, %s141
      %s144 = sphi 0, %s143
      %s158 = sphi 0, %s144
      %s162 = sphi 0, %s162
      %s164 = sphi 0, %s162
      %s165 = sphi 0, %s164
      %s179 = sphi 0, %s165
      %s187 = sphi 0, %s189
      %s190 = sphi 0, %s187
      %s191 = sphi 0, %s190
      %s207 = sphi 0, %s191
    $region4: #{tpu_custom_call.1} parent=1 // loop_header_branch
      %20 = sbr.rel (%p18) target = $region8
    $region5: #{tpu_custom_call.1} parent=1 // loop_body
      %s22 = ssub.s32 %s17, 1
      %s23 = ssub.s32 %s17, 2
      %s30 = sadd.s32 1, %s25
      %p31 = scmp.ge.s32.totalorder %s30, 1
      %s32 = scalar_select %p31, 0, %s30
      %s33 = sadd.s32 1, %s24
      %s34 = scalar_select %p31, %s33, %s24
      %p35 = scmp.ge.s32.totalorder %s34, 2
      %s36 = scalar_select %p35, 0, %s34
      %s37 = ssub.s32 %s25, 1
      %p38 = scmp.lt.s32.totalorder %s37, 0
      %s39 = scalar_select %p38, %s37, 0
      %p40 = scmp.gt.s32.totalorder %s39, 0
      %s41 = scalar_select %p40, %s39, 0
      %s42 = ssub.s32 %s32, 1
      %p43 = scmp.lt.s32.totalorder %s42, 0
      %s44 = scalar_select %p43, %s42, 0
      %p45 = scmp.gt.s32.totalorder %s44, 0
      %s46 = scalar_select %p45, %s44, 0
      %s47 = ssub.s32 %s24, %s36
      %s48 = ssub.s32 %s41, %s46
      %s49 = sor.u32 %s47, %s48
      %p50 = scmp.eq.s32.totalorder %s49, 0
      %s52 = sadd.s32 %s51, 1
      %s53 = scalar_select %p50, %s51, %s52
      %p56 = pneg %p50
      %p57 = scmp.eq.s32.totalorder %s17, 1
      %p58 = por %p56, %p57
      %p59 = scmp.ne.s32.totalorder %s51, %s54
      %p60 = scmp.eq.s32.totalorder %s17, 0
      %p61 = por %p59, %p60
      %p62 = scmp.ne.s32.totalorder %s51, %s54
      %p63 = scmp.eq.s32.totalorder %s22, 1
      %p64 = por %p62, %p63
      %p65 = scmp.ne.s32.totalorder %s54, %s55
      %p66 = scmp.eq.s32.totalorder %s22, 0
      %p67 = por %p65, %p66
      %p68 = scmp.ne.s32.totalorder %s54, %s55
      %p69 = scmp.eq.s32.totalorder %s23, 1
      %p70 = por %p68, %p69
      %p72 = scmp.ne.s32.totalorder %s55, %s71
      %p73 = scmp.eq.s32.totalorder %s23, 0
      %p74 = por %p72, %p73
      %p75 = scmp.lt.s32.totalorder %s25, 0
      %s76 = scalar_select %p75, %s25, 0
      %p77 = scmp.lt.s32.totalorder %s32, 0
      %s78 = scalar_select %p77, %s32, 0
      %s79 = ssub.s32 %s24, %s36
      %s80 = ssub.s32 %s76, %s78
      %s81 = sor.u32 %s79, %s80
      %p82 = scmp.eq.s32.totalorder %s81, 0
      %s84 = sadd.s32 %s83, 1
      %s85 = scalar_select %p82, %s83, %s84
      %p88 = pneg %p82
      %p89 = scmp.eq.s32.totalorder %s17, 1
      %p90 = por %p88, %p89
      %p91 = scmp.ne.s32.totalorder %s83, %s86
      %p92 = scmp.eq.s32.totalorder %s17, 0
      %p93 = por %p91, %p92
      %p94 = scmp.ne.s32.totalorder %s83, %s86
      %p95 = scmp.eq.s32.totalorder %s22, 1
      %p96 = por %p94, %p95
      %p97 = scmp.ne.s32.totalorder %s86, %s87
      %p98 = scmp.eq.s32.totalorder %s22, 0
      %p99 = por %p97, %p98
      %p100 = scmp.ne.s32.totalorder %s86, %s87
      %p101 = scmp.eq.s32.totalorder %s23, 1
      %p102 = por %p100, %p101
      %p104 = scmp.ne.s32.totalorder %s87, %s103
      %p105 = scmp.eq.s32.totalorder %s23, 0
      %p106 = por %p104, %p105
      %s107 = sadd.s32 %s25, 1
      %p108 = scmp.lt.s32.totalorder %s107, 0
      %s109 = scalar_select %p108, %s107, 0
      %s110 = sadd.s32 %s32, 1
      %p111 = scmp.lt.s32.totalorder %s110, 0
      %s112 = scalar_select %p111, %s110, 0
      %s113 = ssub.s32 %s24, %s36
      %s114 = ssub.s32 %s109, %s112
      %s115 = sor.u32 %s113, %s114
      %p116 = scmp.eq.s32.totalorder %s115, 0
      %s118 = sadd.s32 %s117, 1
      %s119 = scalar_select %p116, %s117, %s118
      %p122 = pneg %p116
      %p123 = scmp.eq.s32.totalorder %s17, 1
      %p124 = por %p122, %p123
      %p125 = scmp.ne.s32.totalorder %s117, %s120
      %p126 = scmp.eq.s32.totalorder %s17, 0
      %p127 = por %p125, %p126
      %p128 = scmp.ne.s32.totalorder %s117, %s120
      %p129 = scmp.eq.s32.totalorder %s22, 1
      %p130 = por %p128, %p129
      %p131 = scmp.ne.s32.totalorder %s120, %s121
      %p132 = scmp.eq.s32.totalorder %s22, 0
      %p133 = por %p131, %p132
      %p134 = scmp.ne.s32.totalorder %s120, %s121
      %p135 = scmp.eq.s32.totalorder %s23, 1
      %p136 = por %p134, %p135
      %p138 = scmp.ne.s32.totalorder %s121, %s137
      %p139 = scmp.eq.s32.totalorder %s23, 0
      %p140 = por %p138, %p139
      %s142 = sadd.s32 %s141, 1
      %p145 = scmp.eq.s32.totalorder %s17, 1
      %p146 = scmp.ne.s32.totalorder %s141, %s143
      %p147 = scmp.eq.s32.totalorder %s17, 0
      %p148 = por %p146, %p147
      %p149 = scmp.ne.s32.totalorder %s141, %s143
      %p150 = scmp.eq.s32.totalorder %s22, 1
      %p151 = por %p149, %p150
      %p152 = scmp.ne.s32.totalorder %s143, %s144
      %p153 = scmp.eq.s32.totalorder %s22, 0
      %p154 = por %p152, %p153
      %p155 = scmp.ne.s32.totalorder %s143, %s144
      %p156 = scmp.eq.s32.totalorder %s23, 1
      %p157 = por %p155, %p156
      %p159 = scmp.ne.s32.totalorder %s144, %s158
      %p160 = scmp.eq.s32.totalorder %s23, 0
      %p161 = por %p159, %p160
      %s163 = sadd.s32 %s162, 1
      %p166 = scmp.eq.s32.totalorder %s17, 1
      %p167 = scmp.ne.s32.totalorder %s162, %s164
      %p168 = scmp.eq.s32.totalorder %s17, 0
      %p169 = por %p167, %p168
      %p170 = scmp.ne.s32.totalorder %s162, %s164
      %p171 = scmp.eq.s32.totalorder %s22, 1
      %p172 = por %p170, %p171
      %p173 = scmp.ne.s32.totalorder %s164, %s165
      %p174 = scmp.eq.s32.totalorder %s22, 0
      %p175 = por %p173, %p174
      %p176 = scmp.ne.s32.totalorder %s164, %s165
      %p177 = scmp.eq.s32.totalorder %s23, 1
      %p178 = por %p176, %p177
      %p180 = scmp.ne.s32.totalorder %s165, %s179
      %p181 = scmp.eq.s32.totalorder %s23, 0
      %p182 = por %p180, %p181
      %s183 = ssub.s32 %s24, %s36
      %s184 = ssub.s32 %s25, %s32
      %s185 = sor.u32 %s183, %s184
      %p186 = scmp.eq.s32.totalorder %s185, 0
      %s188 = sadd.s32 %s187, 1
      %s189 = scalar_select %p186, %s187, %s188
      %p192 = pneg %p186
      %p193 = scmp.eq.s32.totalorder %s17, 1
      %p194 = por %p192, %p193
      %p195 = scmp.ne.s32.totalorder %s187, %s190
      %p196 = scmp.eq.s32.totalorder %s17, 0
      %p197 = por %p195, %p196
      %p198 = scmp.ne.s32.totalorder %s187, %s190
      %p199 = scmp.eq.s32.totalorder %s22, 1
      %p200 = por %p198, %p199
      %p201 = scmp.ne.s32.totalorder %s190, %s191
      %p202 = scmp.eq.s32.totalorder %s22, 0
      %p203 = por %p201, %p202
      %p204 = scmp.ne.s32.totalorder %s190, %s191
      %p205 = scmp.eq.s32.totalorder %s23, 1
      %p206 = por %p204, %p205
      %p208 = scmp.ne.s32.totalorder %s191, %s207
      %p209 = scmp.eq.s32.totalorder %s23, 0
      %p210 = por %p208, %p209
      %p211 = scmp.le.s32.totalorder 1, %s17
      %p212 = scmp.lt.s32.totalorder %s17, 3
      %p213 = pnand %p211, %p212
      %p214 = pneg %p213
      // Predicated region
      $region9: #{tpu_custom_call.1} parent=5 // pred_check
        _
      $region10: #{tpu_custom_call.1} parent=5 // pred_check_branch
        %216 = sbr.rel (%p213) target = $region12
      $region11: #{tpu_custom_call.1} parent=5 // pred_region
        %s217 = ssub.s32 %s17, 1
        // Predicated region
        $region13: #{tpu_custom_call.1} parent=11 // pred_check
          %p218 = pneg %p154
        $region14: #{tpu_custom_call.1} parent=11 // pred_check_branch
          %220 = sbr.rel (%p218) target = $region16
        $region15: #{tpu_custom_call.1} parent=11 // pred_region
          _
        $region16: #{tpu_custom_call.1} parent=11 // pred_fallthru
          _
        // Predicated region
        $region17: #{tpu_custom_call.1} parent=11 // pred_check
          %p221 = pneg %p175
        $region18: #{tpu_custom_call.1} parent=11 // pred_check_branch
          %223 = sbr.rel (%p221) target = $region20
        $region19: #{tpu_custom_call.1} parent=11 // pred_region
          _
        $region20: #{tpu_custom_call.1} parent=11 // pred_fallthru
          _
      $region12: #{tpu_custom_call.1} parent=5 // pred_fallthru
        _
      %p224 = scmp.lt.s32.totalorder %s17, 2
      // Predicated region
      $region21: #{tpu_custom_call.1} parent=5 // pred_check
        %p225 = pneg %p224
      $region22: #{tpu_custom_call.1} parent=5 // pred_check_branch
        %227 = sbr.rel (%p225) target = $region24
      $region23: #{tpu_custom_call.1} parent=5 // pred_region
        // Predicated region
        $region25: #{tpu_custom_call.1} parent=23 // pred_check
          %p228 = pneg %p61
        $region26: #{tpu_custom_call.1} parent=23 // pred_check_branch
          %230 = sbr.rel (%p228) target = $region28
        $region27: #{tpu_custom_call.1} parent=23 // pred_region
          %s231 = ssub.s32 %s25, 1
          %p232 = scmp.lt.s32.totalorder %s231, 0
          %s233 = scalar_select %p232, %s231, 0
          %p234 = scmp.gt.s32.totalorder %s233, 0
          %s235 = scalar_select %p234, %s233, 0
          %p236 = scmp.lt.s32.totalorder %s24, 1
          %s237 = scalar_select %p236, %s24, 1
          %p238 = scmp.lt.s32.totalorder %s235, 0
          %s239 = scalar_select %p238, %s235, 0
          %s240 = sadd.s32 %s239, %s237
          %s241 = smul.addr %s240, 8
          %s242 = scalar_lea.vmem %s0, %s241
          %s243 = ssub.s32 %s25, 1
          %p244 = scmp.lt.s32.totalorder %s243, 0
          %s245 = scalar_select %p244, %s243, 0
          %p246 = scmp.gt.s32.totalorder %s245, 0
          %s247 = scalar_select %p246, %s245, 0
        $region28: #{tpu_custom_call.1} parent=23 // pred_fallthru
          _
        // Predicated region
        $region29: #{tpu_custom_call.1} parent=23 // pred_check
          %p248 = pneg %p93
        $region30: #{tpu_custom_call.1} parent=23 // pred_check_branch
          %250 = sbr.rel (%p248) target = $region32
        $region31: #{tpu_custom_call.1} parent=23 // pred_region
          %p251 = scmp.lt.s32.totalorder %s25, 0
          %s252 = scalar_select %p251, %s25, 0
          %p253 = scmp.lt.s32.totalorder %s24, 1
          %s254 = scalar_select %p253, %s24, 1
          %p255 = scmp.lt.s32.totalorder %s252, 0
          %s256 = scalar_select %p255, %s252, 0
          %s257 = sadd.s32 %s256, %s254
          %s258 = smul.addr %s257, 8
          %s259 = scalar_lea.vmem %s1, %s258
          %p260 = scmp.lt.s32.totalorder %s25, 0
          %s261 = scalar_select %p260, %s25, 0
        $region32: #{tpu_custom_call.1} parent=23 // pred_fallthru
          _
        // Predicated region
        $region33: #{tpu_custom_call.1} parent=23 // pred_check
          %p262 = pneg %p127
        $region34: #{tpu_custom_call.1} parent=23 // pred_check_branch
          %264 = sbr.rel (%p262) target = $region36
        $region35: #{tpu_custom_call.1} parent=23 // pred_region
          %s265 = sand.u32 %s117, 1
          %s266 = scalar_lea.sflag [#allocation4], %s265
          %s267 = sand.u32 %s117, 1
          %s268 = smul.addr %s267, 8
          %s269 = scalar_lea.vmem [#allocation3], %s268
          %s270 = sadd.s32 %s25, 1
          %p271 = scmp.lt.s32.totalorder %s270, 0
          %s272 = scalar_select %p271, %s270, 0
          %s274 = ssub.s32 128, 128
          %275 = vsyncadd %s266, %s274
          %s276 = sadd.s32 %s272, %s24
          %s277 = smul.addr %s276, 128
          %s278 = scalar_lea.hbm %s2, %s277
          %s280 = sshll.u32 %s269, 4
          %s281 = int_to_ptr.vmem [resolvable:$true] %s280
          %283 = dma.hbm_to_vmem [thread:$0]  %s278, 128, %s281, %s266
        $region36: #{tpu_custom_call.1} parent=23 // pred_fallthru
          _
      $region24: #{tpu_custom_call.1} parent=5 // pred_fallthru
        _
      %p284 = scmp.le.s32.totalorder 1, %s17
      %p285 = scmp.lt.s32.totalorder %s17, 3
      %p286 = pnand %p284, %p285
      %p287 = pneg %p286
      // Predicated region
      $region37: #{tpu_custom_call.1} parent=5 // pred_check
        _
      $region38: #{tpu_custom_call.1} parent=5 // pred_check_branch
        %289 = sbr.rel (%p286) target = $region40
      $region39: #{tpu_custom_call.1} parent=5 // pred_region
        %s290 = ssub.s32 %s17, 1
        %s291 = sand.u32 %s120, 1
        %s292 = scalar_lea.sflag [#allocation4], %s291
        %s293 = sand.u32 %s120, 1
        %s294 = smul.addr %s293, 8
        %s295 = scalar_lea.vmem [#allocation3], %s294
        // Predicated region
        $region41: #{tpu_custom_call.1} parent=39 // pred_check
          %p296 = pneg %p133
        $region42: #{tpu_custom_call.1} parent=39 // pred_check_branch
          %298 = sbr.rel (%p296) target = $region44
        $region43: #{tpu_custom_call.1} parent=39 // pred_region
          %299 = dma.done %s292, 128
        $region44: #{tpu_custom_call.1} parent=39 // pred_fallthru
          _
        %s300 = ssub.s32 %s27, 1
        %p301 = scmp.lt.s32.totalorder %s300, 0
        %s302 = scalar_select %p301, %s300, 0
        %p303 = scmp.gt.s32.totalorder %s302, 0
        %s304 = scalar_select %p303, %s302, 0
        %p305 = scmp.lt.s32.totalorder %s26, 1
        %s306 = scalar_select %p305, %s26, 1
        %p307 = scmp.lt.s32.totalorder %s304, 0
        %s308 = scalar_select %p307, %s304, 0
        %s309 = sadd.s32 %s308, %s306
        %s310 = smul.addr %s309, 8
        %s311 = scalar_lea.vmem %s0, %s310
        %p312 = pneg %p67
        %p313 = pneg %p64
        %p314 = scmp.lt.s32.totalorder %s27, 0
        %s315 = scalar_select %p314, %s27, 0
        %p316 = scmp.lt.s32.totalorder %s26, 1
        %s317 = scalar_select %p316, %s26, 1
        %p318 = scmp.lt.s32.totalorder %s315, 0
        %s319 = scalar_select %p318, %s315, 0
        %s320 = sadd.s32 %s319, %s317
        %s321 = smul.addr %s320, 8
        %s322 = scalar_lea.vmem %s1, %s321
        %p323 = pneg %p99
        %p324 = pneg %p96
        %s325 = sand.u32 %s120, 1
        %s326 = scalar_lea.sflag [#allocation4], %s325
        %s327 = sand.u32 %s120, 1
        %s328 = smul.addr %s327, 8
        %s329 = scalar_lea.vmem [#allocation3], %s328
        %p330 = pneg %p133
        %p331 = pneg %p130
        %p332 = pneg %p154
        %p333 = pneg %p151
        %p334 = pneg %p175
        %p335 = pneg %p172
        %p336 = pneg %p203
        %p337 = pneg %p200
        %s338 = sand.u32 %s190, 1
        %s339 = scalar_lea.sflag [#allocation5], %s338
        %s340 = sand.u32 %s190, 1
        %s341 = smul.addr %s340, 16
        %s342 = scalar_lea.vmem [#allocation6], %s341
        %s343 = ssub.s32 %s27, 1
        %p344 = scmp.lt.s32.totalorder %s343, 0
        %s345 = scalar_select %p344, %s343, 0
        %p346 = scmp.gt.s32.totalorder %s345, 0
        %s347 = scalar_select %p346, %s345, 0
        %p348 = scmp.lt.s32.totalorder %s26, 1
        %s349 = scalar_select %p348, %s26, 1
        %p350 = scmp.lt.s32.totalorder %s347, 0
        %s351 = scalar_select %p350, %s347, 0
        %s352 = sadd.s32 %s351, %s349
        %s353 = smul.addr %s352, 8
        %s354 = scalar_lea.vmem %s0, %s353
        %s355 = ssub.s32 %s27, 1
        %p356 = scmp.lt.s32.totalorder %s355, 0
        %s357 = scalar_select %p356, %s355, 0
        %p358 = scmp.gt.s32.totalorder %s357, 0
        %s359 = scalar_select %p358, %s357, 0
        %p360 = scmp.lt.s32.totalorder %s27, 0
        %s361 = scalar_select %p360, %s27, 0
        %p362 = scmp.lt.s32.totalorder %s26, 1
        %s363 = scalar_select %p362, %s26, 1
        %p364 = scmp.lt.s32.totalorder %s361, 0
        %s365 = scalar_select %p364, %s361, 0
        %s366 = sadd.s32 %s365, %s363
        %s367 = smul.addr %s366, 8
        %s368 = scalar_lea.vmem %s1, %s367
        %p369 = scmp.lt.s32.totalorder %s27, 0
        %s370 = scalar_select %p369, %s27, 0
        %s371 = sadd.s32 %s27, 1
        %p372 = scmp.lt.s32.totalorder %s371, 0
        %s373 = scalar_select %p372, %s371, 0
        %s374 = smul.u32 %s27, 128
        %s375 = ssub.s32 %s374, 128
        %p376 = scmp.lt.s32.totalorder %s375, 0
        %p377 = scmp.gt.s32.totalorder %s374, 128
        %p378 = por %p376, %p377
        // Predicated region
        $region45: #{tpu_custom_call.1} parent=39 // pred_check
          %p379 = pneg %p378
        $region46: #{tpu_custom_call.1} parent=39 // pred_check_branch
          %381 = sbr.rel (%p379) target = $region48
        $region47: #{tpu_custom_call.1} parent=39 // pred_region
          %v382 = vld [vmem:[%s354] sm:$0xff]
          %v383 = vlaneseq
          %v384 = vand.u32 %v383, 127
          %v385 = vstv %s375
          %v386 = vadd.s32 %v385, %v384
          %vm387 = vcmp.ge.s32.totalorder %v386, 0
          %vm388 = vcmp.lt.s32.totalorder %v386, 128
          %vm389 = vmand %vm387, %vm388
          %v390 = vsel %vm389, 1, 0
          %vm391 = vcmp.eq.s32.totalorder %v390, 1
          %v392 = vsel %vm391, %v382, 0.0
          %393 = vst [vmem:[#allocation2] sm:$0xff] %v392
        $region48: #{tpu_custom_call.1} parent=39 // pred_fallthru
          _
        %p394 = pneg %p378
        // Predicated region
        $region49: #{tpu_custom_call.1} parent=39 // pred_check
          _
        $region50: #{tpu_custom_call.1} parent=39 // pred_check_branch
          %396 = sbr.rel (%p378) target = $region52
        $region51: #{tpu_custom_call.1} parent=39 // pred_region
          %v397 = vld [vmem:[%s354] sm:$0xff]
          %398 = vst [vmem:[#allocation2] sm:$0xff] %v397
        $region52: #{tpu_custom_call.1} parent=39 // pred_fallthru
          _
        %p399 = scmp.lt.s32.totalorder %s374, 0
        %s400 = sadd.s32 %s374, 128
        %p401 = scmp.gt.s32.totalorder %s400, 128
        %p402 = por %p399, %p401
        // Predicated region
        $region53: #{tpu_custom_call.1} parent=39 // pred_check
          %p403 = pneg %p402
        $region54: #{tpu_custom_call.1} parent=39 // pred_check_branch
          %405 = sbr.rel (%p403) target = $region56
        $region55: #{tpu_custom_call.1} parent=39 // pred_region
          %v406 = vld [vmem:[%s368] sm:$0xff]
          %v407 = vlaneseq
          %v408 = vand.u32 %v407, 127
          %v409 = vstv %s374
          %v410 = vadd.s32 %v409, %v408
          %vm411 = vcmp.ge.s32.totalorder %v410, 0
          %vm412 = vcmp.lt.s32.totalorder %v410, 128
          %vm413 = vmand %vm411, %vm412
          %v414 = vsel %vm413, 1, 0
          %vm415 = vcmp.eq.s32.totalorder %v414, 1
          %v416 = vsel %vm415, %v406, 0.0
          %417 = vst [vmem:[#allocation2 + $0x8] sm:$0xff] %v416
        $region56: #{tpu_custom_call.1} parent=39 // pred_fallthru
          _
        %p418 = pneg %p402
        // Predicated region
        $region57: #{tpu_custom_call.1} parent=39 // pred_check
          _
        $region58: #{tpu_custom_call.1} parent=39 // pred_check_branch
          %420 = sbr.rel (%p402) target = $region60
        $region59: #{tpu_custom_call.1} parent=39 // pred_region
          %v421 = vld [vmem:[%s368] sm:$0xff]
          %422 = vst [vmem:[#allocation2 + $0x8] sm:$0xff] %v421
        $region60: #{tpu_custom_call.1} parent=39 // pred_fallthru
          _
        %p423 = scmp.lt.s32.totalorder %s400, 0
        %s424 = sadd.s32 %s374, 256
        %p425 = scmp.gt.s32.totalorder %s424, 128
        %p426 = por %p423, %p425
        // Predicated region
        $region61: #{tpu_custom_call.1} parent=39 // pred_check
          %p427 = pneg %p426
        $region62: #{tpu_custom_call.1} parent=39 // pred_check_branch
          %429 = sbr.rel (%p427) target = $region64
        $region63: #{tpu_custom_call.1} parent=39 // pred_region
          %v430 = vld [vmem:[%s295] sm:$0xff]
          %v431 = vlaneseq
          %v432 = vand.u32 %v431, 127
          %v433 = vstv %s400
          %v434 = vadd.s32 %v433, %v432
          %vm435 = vcmp.ge.s32.totalorder %v434, 0
          %vm436 = vcmp.lt.s32.totalorder %v434, 128
          %vm437 = vmand %vm435, %vm436
          %v438 = vsel %vm437, 1, 0
          %vm439 = vcmp.eq.s32.totalorder %v438, 1
          %v440 = vsel %vm439, %v430, 0.0
          %441 = vst [vmem:[#allocation2 + $0x10] sm:$0xff] %v440
        $region64: #{tpu_custom_call.1} parent=39 // pred_fallthru
          _
        %p442 = pneg %p426
        // Predicated region
        $region65: #{tpu_custom_call.1} parent=39 // pred_check
          _
        $region66: #{tpu_custom_call.1} parent=39 // pred_check_branch
          %444 = sbr.rel (%p426) target = $region68
        $region67: #{tpu_custom_call.1} parent=39 // pred_region
          %v445 = vld [vmem:[%s295] sm:$0xff]
          %446 = vst [vmem:[#allocation2 + $0x10] sm:$0xff] %v445
        $region68: #{tpu_custom_call.1} parent=39 // pred_fallthru
          _
        %v447 = vld [vmem:[%s3] sm:$0xff]
        %v448 = vld [vmem:[#allocation2] sm:$0xff]
        %v449 = vld [vmem:[#allocation2 + $0x8] sm:$0xff]
        %451 = vset.pattern.permute.xlu0 0
        %452 = vperm.xlu0 %451, %v447
        %v453 = vpop.permute.xlu0 %452
        %v455 = vmul.f32 %v448, %v453
        %v456 = vmul.f32 %v449, %v453
        %457 = vset.pattern.permute.xlu0 1
        %458 = vperm.xlu0 %457, %v447
        %v459 = vpop.permute.xlu0 %458
        %v461 = vmul.f32 %v449, %v459
        %463 = vrot.lane.b32.xlu0 %v461, 127
        %v464 = vpop.permute.xlu0 %463
        %v466 = vadd.f32 %v455, %v464
        %v467 = vadd.f32 %v456, %v464
        %v468 = vld [vmem:[#allocation2 + $0x8] sm:$0xff]
        %v469 = vld [vmem:[#allocation2 + $0x10] sm:$0xff]
        %470 = vset.pattern.permute.xlu0 2
        %471 = vperm.xlu0 %470, %v447
        %v472 = vpop.permute.xlu0 %471
        %v474 = vmul.f32 %v468, %v472
        %v475 = vmul.f32 %v469, %v472
        %478 = vrot.lane.b32.xlu0 %v474, 126
        %v479 = vpop.permute.xlu0 %478
        %480 = vrot.lane.b32.xlu0 %v475, 126
        %v481 = vpop.permute.xlu0 %480
        %vm482 = vcmask 1031168
        %v483 = vsel %vm482, %v479, %v481
        %v486 = vadd.f32 %v466, %v479
        %v487 = vadd.f32 %v467, %v483
        %v488 = vld [vmem:[%s4] sm:$0xff]
        %v489 = vld [vmem:[%s4 + $0x8] sm:$0xff]
        %491 = vset.pattern.permute.xlu0 0
        %492 = vperm.xlu0 %491, %v488
        %v493 = vpop.permute.xlu0 %492
        %496 = vset.pattern.permute.xlu0 0
        %497 = vperm.xlu0 %496, %v489
        %v498 = vpop.permute.xlu0 %497
        %v500 = vlaneseq
        %v501 = vshrl.u32 %v500, 7
        %v502 = vsub.s32 0, %v501
        %v503 = vrot.slane %v486, %v502
        %v504 = vlaneseq
        %v505 = vshrl.u32 %v504, 7
        %v506 = vsub.s32 0, %v505
        %v507 = vrot.slane %v487, %v506
        %v508 = vmul.f32 %v493, %v503
        %v509 = vmul.f32 %v493, %v507
        %v510 = vmul.f32 %v498, %v503
        %v511 = vmul.f32 %v498, %v507
        %512 = vset.pattern.permute.xlu0 1
        %513 = vperm.xlu0 %512, %v488
        %v514 = vpop.permute.xlu0 %513
        %516 = vset.pattern.permute.xlu0 1
        %517 = vperm.xlu0 %516, %v489
        %v518 = vpop.permute.xlu0 %517
        %v520 = vlaneseq
        %v521 = vshrl.u32 %v520, 7
        %v522 = vsub.s32 1, %v521
        %v523 = vrot.slane %v486, %v522
        %v524 = vlaneseq
        %v525 = vshrl.u32 %v524, 7
        %v526 = vsub.s32 1, %v525
        %v527 = vrot.slane %v487, %v526
        %v528 = vmul.f32 %v514, %v523
        %v529 = vmul.f32 %v514, %v527
        %v530 = vmul.f32 %v518, %v523
        %v531 = vmul.f32 %v518, %v527
        %v532 = vadd.f32 %v508, %v528
        %v533 = vadd.f32 %v509, %v529
        %v534 = vadd.f32 %v510, %v530
        %v535 = vadd.f32 %v511, %v531
        %536 = vset.pattern.permute.xlu0 2
        %537 = vperm.xlu0 %536, %v488
        %v538 = vpop.permute.xlu0 %537
        %540 = vset.pattern.permute.xlu0 2
        %541 = vperm.xlu0 %540, %v489
        %v542 = vpop.permute.xlu0 %541
        %v544 = vlaneseq
        %v545 = vshrl.u32 %v544, 7
        %v546 = vsub.s32 2, %v545
        %v547 = vrot.slane %v486, %v546
        %v548 = vlaneseq
        %v549 = vshrl.u32 %v548, 7
        %v550 = vsub.s32 2, %v549
        %v551 = vrot.slane %v487, %v550
        %v552 = vmul.f32 %v538, %v547
        %v553 = vmul.f32 %v538, %v551
        %v554 = vmul.f32 %v542, %v547
        %v555 = vmul.f32 %v542, %v551
        %v556 = vadd.f32 %v532, %v552
        %v557 = vadd.f32 %v533, %v553
        %v558 = vadd.f32 %v534, %v554
        %v559 = vadd.f32 %v535, %v555
        %560 = vset.pattern.permute.xlu0 3
        %561 = vperm.xlu0 %560, %v488
        %v562 = vpop.permute.xlu0 %561
        %564 = vset.pattern.permute.xlu0 3
        %565 = vperm.xlu0 %564, %v489
        %v566 = vpop.permute.xlu0 %565
        %v568 = vlaneseq
        %v569 = vshrl.u32 %v568, 7
        %v570 = vsub.s32 3, %v569
        %v571 = vrot.slane %v486, %v570
        %v572 = vlaneseq
        %v573 = vshrl.u32 %v572, 7
        %v574 = vsub.s32 3, %v573
        %v575 = vrot.slane %v487, %v574
        %v576 = vmul.f32 %v562, %v571
        %v577 = vmul.f32 %v562, %v575
        %v578 = vmul.f32 %v566, %v571
        %v579 = vmul.f32 %v566, %v575
        %v580 = vadd.f32 %v556, %v576
        %v581 = vadd.f32 %v557, %v577
        %v582 = vadd.f32 %v558, %v578
        %v583 = vadd.f32 %v559, %v579
        %584 = vset.pattern.permute.xlu0 4
        %585 = vperm.xlu0 %584, %v488
        %v586 = vpop.permute.xlu0 %585
        %588 = vset.pattern.permute.xlu0 4
        %589 = vperm.xlu0 %588, %v489
        %v590 = vpop.permute.xlu0 %589
        %v592 = vlaneseq
        %v593 = vshrl.u32 %v592, 7
        %v594 = vsub.s32 4, %v593
        %v595 = vrot.slane %v486, %v594
        %v596 = vlaneseq
        %v597 = vshrl.u32 %v596, 7
        %v598 = vsub.s32 4, %v597
        %v599 = vrot.slane %v487, %v598
        %v600 = vmul.f32 %v586, %v595
        %v601 = vmul.f32 %v586, %v599
        %v602 = vmul.f32 %v590, %v595
        %v603 = vmul.f32 %v590, %v599
        %v604 = vadd.f32 %v580, %v600
        %v605 = vadd.f32 %v581, %v601
        %v606 = vadd.f32 %v582, %v602
        %v607 = vadd.f32 %v583, %v603
        %608 = vset.pattern.permute.xlu0 5
        %609 = vperm.xlu0 %608, %v488
        %v610 = vpop.permute.xlu0 %609
        %612 = vset.pattern.permute.xlu0 5
        %613 = vperm.xlu0 %612, %v489
        %v614 = vpop.permute.xlu0 %613
        %v616 = vlaneseq
        %v617 = vshrl.u32 %v616, 7
        %v618 = vsub.s32 5, %v617
        %v619 = vrot.slane %v486, %v618
        %v620 = vlaneseq
        %v621 = vshrl.u32 %v620, 7
        %v622 = vsub.s32 5, %v621
        %v623 = vrot.slane %v487, %v622
        %v624 = vmul.f32 %v610, %v619
        %v625 = vmul.f32 %v610, %v623
        %v626 = vmul.f32 %v614, %v619
        %v627 = vmul.f32 %v614, %v623
        %v628 = vadd.f32 %v604, %v624
        %v629 = vadd.f32 %v605, %v625
        %v630 = vadd.f32 %v606, %v626
        %v631 = vadd.f32 %v607, %v627
        %632 = vset.pattern.permute.xlu0 6
        %633 = vperm.xlu0 %632, %v488
        %v634 = vpop.permute.xlu0 %633
        %636 = vset.pattern.permute.xlu0 6
        %637 = vperm.xlu0 %636, %v489
        %v638 = vpop.permute.xlu0 %637
        %v640 = vlaneseq
        %v641 = vshrl.u32 %v640, 7
        %v642 = vsub.s32 6, %v641
        %v643 = vrot.slane %v486, %v642
        %v644 = vlaneseq
        %v645 = vshrl.u32 %v644, 7
        %v646 = vsub.s32 6, %v645
        %v647 = vrot.slane %v487, %v646
        %v648 = vmul.f32 %v634, %v643
        %v649 = vmul.f32 %v634, %v647
        %v650 = vmul.f32 %v638, %v643
        %v651 = vmul.f32 %v638, %v647
        %v652 = vadd.f32 %v628, %v648
        %v653 = vadd.f32 %v629, %v649
        %v654 = vadd.f32 %v630, %v650
        %v655 = vadd.f32 %v631, %v651
        %656 = vset.pattern.permute.xlu0 7
        %657 = vperm.xlu0 %656, %v488
        %v658 = vpop.permute.xlu0 %657
        %660 = vset.pattern.permute.xlu0 7
        %661 = vperm.xlu0 %660, %v489
        %v662 = vpop.permute.xlu0 %661
        %v664 = vlaneseq
        %v665 = vshrl.u32 %v664, 7
        %v666 = vsub.s32 7, %v665
        %v667 = vrot.slane %v486, %v666
        %v668 = vlaneseq
        %v669 = vshrl.u32 %v668, 7
        %v670 = vsub.s32 7, %v669
        %v671 = vrot.slane %v487, %v670
        %v672 = vmul.f32 %v658, %v667
        %v673 = vmul.f32 %v658, %v671
        %v674 = vmul.f32 %v662, %v667
        %v675 = vmul.f32 %v662, %v671
        %v676 = vadd.f32 %v652, %v672
        %v677 = vadd.f32 %v653, %v673
        %v678 = vadd.f32 %v654, %v674
        %v679 = vadd.f32 %v655, %v675
        %684 = vrot.lane.b32.xlu0 %v676, 1
        %v685 = vpop.permute.xlu0 %684
        %686 = vrot.lane.b32.xlu0 %v677, 1
        %v687 = vpop.permute.xlu0 %686
        %688 = vrot.lane.b32.xlu0 %v678, 1
        %v689 = vpop.permute.xlu0 %688
        %690 = vrot.lane.b32.xlu0 %v679, 1
        %v691 = vpop.permute.xlu0 %690
        %vm692 = vcmask 7168
        %v693 = vsel %vm692, %v685, %v687
        %v694 = vsel %vm692, %v689, %v691
        %697 = vst [vmem:[%s342] sm:$0xff] %v693
        %698 = vst [vmem:[%s342 + $0x8] sm:$0xff] %v694
        %s699 = sand.u32 %s190, 1
        %s700 = scalar_lea.sflag [#allocation5], %s699
        %s701 = sand.u32 %s190, 1
        %s702 = smul.addr %s701, 16
        %s703 = scalar_lea.vmem [#allocation6], %s702
        // Predicated region
        $region69: #{tpu_custom_call.1} parent=39 // pred_check
          %p704 = pneg %p200
        $region70: #{tpu_custom_call.1} parent=39 // pred_check_branch
          %706 = sbr.rel (%p704) target = $region72
        $region71: #{tpu_custom_call.1} parent=39 // pred_region
          %s708 = ssub.s32 256, 256
          %709 = vsyncadd %s700, %s708
          %s710 = smul.addr %s26, 2
          %s711 = sadd.s32 %s27, %s710
          %s712 = smul.addr %s711, 128
          %s713 = scalar_lea.hbm %s5, %s712
          %s714 = sshll.u32 %s703, 4
          %s715 = int_to_ptr.vmem [resolvable:$true] %s714
          %720 = dma.vmem_to_hbm [thread:$0]  %s715, 256, %s713, %s700, 128, 128, 8
        $region72: #{tpu_custom_call.1} parent=39 // pred_fallthru
          _
      $region40: #{tpu_custom_call.1} parent=5 // pred_fallthru
        _
      %p721 = scmp.le.s32.totalorder 2, %s17
      // Predicated region
      $region73: #{tpu_custom_call.1} parent=5 // pred_check
        %p722 = pneg %p721
      $region74: #{tpu_custom_call.1} parent=5 // pred_check_branch
        %724 = sbr.rel (%p722) target = $region76
      $region75: #{tpu_custom_call.1} parent=5 // pred_region
        %s725 = ssub.s32 %s17, 2
        // Predicated region
        $region77: #{tpu_custom_call.1} parent=75 // pred_check
          %p726 = pneg %p206
        $region78: #{tpu_custom_call.1} parent=75 // pred_check_branch
          %728 = sbr.rel (%p726) target = $region80
        $region79: #{tpu_custom_call.1} parent=75 // pred_region
          %s729 = sand.u32 %s191, 1
          %s730 = scalar_lea.sflag [#allocation5], %s729
          %s731 = sand.u32 %s191, 1
          %s732 = smul.addr %s731, 16
          %s733 = scalar_lea.vmem [#allocation6], %s732
          %734 = dma.done %s730, 256
        $region80: #{tpu_custom_call.1} parent=75 // pred_fallthru
          _
      $region76: #{tpu_custom_call.1} parent=5 // pred_fallthru
        _
    $region6: #{tpu_custom_call.1} parent=1 // loop_footer
      %s21 = sadd.s32 1, %s17
    $region7: #{tpu_custom_call.1} parent=1 // loop_footer_branch
      %16 = sbr.rel target = $region3
    $region8: #{tpu_custom_call.1} parent=1 // loop_exit
      _
    %735 = vsyncpa [#allocation4], 1
    %s736 = scalar_lea.sflag [#allocation4], 1
    %737 = vsyncpa %s736, 1
    %738 = vsyncpa [#allocation5], 1
    %s739 = scalar_lea.sflag [#allocation5], 1
    %740 = vsyncpa %s739, 1

</llo_original>
